<compile_context>
chip_gen: v6e
topology: v6e:2x2x1
jax: 0.10.0
libtpu: 0.0.40
codegen_flags: <defaults>
</compile_context>

<pallas_src>
import functools
import math

import jax
import jax.numpy as jnp
from jax.experimental import pallas as pl
from jax.experimental.pallas import tpu as pltpu


def seqmodel_kernel(tile_len_ref, lengths_ref, hid_ref, w_ref, b_ref, trans_ref,
                    tag_ref, feats_scr, part_scr, lastpart_scr, bp_scr, ptr_scr,
                    *, start_idx, stop_idx):
    # tile_len_ref : (nt,)        i32  SMEM  per-tile max sequence length
    # lengths_ref  : (tb, 1)      i32  VMEM  per-sequence lengths (prefix mask)
    # hid_ref      : (1, S*tb, H) bf16 VMEM  hidden states, time-major in tile
    # w_ref        : (H, Tp)      bf16 VMEM  hidden2tag weight (transposed, padded)
    # b_ref        : (1, Tp)      f32  VMEM  hidden2tag bias (padded)
    # trans_ref    : (Tp, Tp)     f32  VMEM  CRF transitions [from, to] (pad = -1e4)
    # tag_ref      : (S, tb, 1)   i32  VMEM  decoded tags (output, time-major)
    S, B, _ = tag_ref.shape                      # B = batch tile size
    Tp = w_ref.shape[1]                          # padded tag size (multiple of 128)

    max_len = jnp.maximum(tile_len_ref[pl.program_id(0)], 1)
    lengths = lengths_ref[...]                   # (B, 1) int32
    trans = trans_ref[...]                       # (Tp, Tp)

    # ---- hidden2tag: one bf16 MXU matmul, lane-dense 128-column output ------
    feats_scr[...] = jnp.dot(hid_ref[0], w_ref[...],
                             preferred_element_type=jnp.float32) + b_ref[...]

    def emit(t):
        # time-major layout: rows [t*B, (t+1)*B) are timestep t's emissions
        start = t * B
        if B % 8 == 0:
            start = pl.multiple_of(start, 8)     # aligned, unmasked sublane slice
        return feats_scr[pl.ds(start, B), :]     # (B, Tp)

    # ---- small loop invariants (NOT broadcast to the batch dim) --------------
    from_idx = jax.lax.broadcasted_iota(jnp.int32, (1, Tp, Tp), 1)
    tag_iota = jax.lax.broadcasted_iota(jnp.int32, (1, Tp), 1)

    # ---- init -----------------------------------------------------------------
    tag_ref[...] = jnp.zeros_like(tag_ref)       # padded positions decode to 0
    # The backtrace may read bp row max_len-1, which the forward loop never
    # writes; zero just that row instead of the whole (S, tb, Tp) scratch.
    bp_scr[max_len - 1] = jnp.zeros((B, Tp), jnp.int32)

    part0 = emit(0) + trans[start_idx:start_idx + 1, :]   # start from START_TAG
    part_scr[...] = part0
    lastpart_scr[...] = part0                    # correct if length == 1

    # ---- Viterbi forward recursion, t = 1 .. max_len-1 ------------------------
    @pl.loop(1, max_len)
    def _(t):
        part = part_scr[...]                                     # (B, Tp)
        # cur[b, from, to] = part[b, from] + trans[from, to]  (broadcast at use)
        cur = part[:, :, None] + trans[None, :, :]               # (B, Tp, Tp)
        best = jnp.max(cur, axis=1)                              # (B, Tp)
        cur_bp = jnp.min(
            jnp.where(cur == best[:, None, :], from_idx, Tp), axis=1
        ).astype(jnp.int32)                                      # argmax 'from'
        # emission is constant along 'from': add it after the max
        new_part = best + emit(t)                                # (B, Tp)
        part_scr[...] = new_part
        # partition at the last valid timestep of each sequence
        lastpart_scr[...] = jnp.where(t == lengths - 1, new_part,
                                      lastpart_scr[...])
        # back-pointers; zero at padded steps (prefix mask: t >= length)
        bp_scr[t - 1] = jnp.where(t < lengths, cur_bp, 0)

    # ---- transition into STOP_TAG (once per tile, outside the serial loop) ----
    lastpart = lastpart_scr[...]                                 # (B, Tp)
    last_values = lastpart[:, :, None] + trans[None, :, :]       # (B, Tp, Tp)
    last_max = jnp.max(last_values, axis=1)
    last_bp = jnp.min(
        jnp.where(last_values == last_max[:, None, :], from_idx, Tp), axis=1)
    end_ptr = last_bp[:, stop_idx:stop_idx + 1].astype(jnp.int32)  # (B, 1)

    # ---- backtrace, idx = min(max_len, S-1)-1 .. 0 -----------------------------
    ptr_scr[...] = end_ptr
    tag_ref[S - 1] = end_ptr

    top = jnp.minimum(max_len, S - 1)

    @pl.loop(0, top)
    def _(i):
        idx = top - 1 - i
        row = bp_scr[idx]                                        # (B, Tp)
        ptr = ptr_scr[...]                                       # (B, 1)
        # one-hot gather: row[b, ptr[b]]
        gathered = jnp.sum(jnp.where(tag_iota == ptr, row, 0),
                           axis=1, keepdims=True)                # (B, 1)
        # emulate the scatter of the end pointer at position length-1
        new_ptr = jnp.where(idx == lengths - 1, end_ptr,
                            gathered).astype(jnp.int32)
        ptr_scr[...] = new_ptr
        tag_ref[idx] = new_ptr


def _round_up(x, m):
    return (x + m - 1) // m * m


def _tile_vmem_bytes(tb, S, H, Tp):
    """Approximate per-tile VMEM working set (double-buffered blocks)."""
    hid = 2 * S * tb * H * 2                      # bf16 hidden block, 2 buffers
    feats = S * tb * Tp * 4                       # emission table scratch
    bp = S * tb * Tp * 4                          # back-pointer scratch
    params = 2 * (H * Tp * 2 + Tp * 4 + Tp * Tp * 4)   # w / bias / transitions
    misc = 4 * tb * Tp * 4 + 2 * (S * tb * 4 + tb * 4)
    return hid + feats + bp + params + misc


def _pick_batch_tile(B, S, H, Tp, budget=36 * 1024 * 1024):
    """Largest batch tile (multiple of 8, divides B, <=256) fitting the budget.

    Budget is sized against v7x's 64 MiB VMEM (fits v5e/v6e too); for B>=16 at
    least two grid tiles are kept so the parallel axis can use both v7x cores.
    """
    if B <= 8 or B % 8 != 0:
        return B
    cands = [t for t in range(8, min(B, 256) + 1, 8) if B % t == 0]
    fitting = [t for t in cands if _tile_vmem_bytes(t, S, H, Tp) <= budget]
    tb = max(fitting) if fitting else min(cands)
    if tb == B and B >= 16:
        halves = [t for t in cands if t <= B // 2]
        if halves:
            tb = max(halves)
    return tb


@jax.jit
def seqmodel_forward(hidden, mask, weight, bias, transitions):
    """SeqModel.forward: tag_seq = crf._viterbi_decode(hidden2tag(hidden), mask)."""
    B, S, H = hidden.shape
    T = weight.shape[0]                           # label_size + 2 (incl. START/STOP)
    START, STOP = T - 2, T - 1
    Tp = max(128, _round_up(T, 128))              # pad tag dim to full lane blocks

    lengths = jnp.sum(mask.astype(jnp.int32), axis=1, keepdims=True)      # (B, 1)

    tb = _pick_batch_tile(B, S, H, Tp)
    nt = B // tb
    tile_maxlen = jnp.max(lengths.reshape(nt, tb), axis=1).astype(jnp.int32)  # (nt,)

    # hidden -> (nt, S*tb, H), time-major inside each tile, bf16 for the MXU
    hid = (hidden.reshape(nt, tb, S, H).transpose(0, 2, 1, 3)
                 .reshape(nt, S * tb, H).astype(jnp.bfloat16))

    # hidden2tag params padded to Tp lanes; transitions padded with -1e4 so
    # padded tags can never win an argmax.
    w = jnp.zeros((H, Tp), jnp.bfloat16).at[:, :T].set(
        jnp.transpose(weight).astype(jnp.bfloat16))
    b = jnp.zeros((1, Tp), jnp.float32).at[:, :T].set(
        bias.reshape(1, T).astype(jnp.float32))
    trans = jnp.full((Tp, Tp), -1.0e4, jnp.float32).at[:T, :T].set(
        transitions.astype(jnp.float32))

    grid_spec = pltpu.PrefetchScalarGridSpec(
        num_scalar_prefetch=1,                    # per-tile max lengths -> SMEM
        grid=(nt,),
        in_specs=[
            pl.BlockSpec((tb, 1), lambda i, ml: (i, 0)),             # lengths
            pl.BlockSpec((1, S * tb, H), lambda i, ml: (i, 0, 0)),   # hidden tile
            pl.BlockSpec((H, Tp), lambda i, ml: (0, 0)),             # weight
            pl.BlockSpec((1, Tp), lambda i, ml: (0, 0)),             # bias
            pl.BlockSpec((Tp, Tp), lambda i, ml: (0, 0)),            # transitions
        ],
        out_specs=pl.BlockSpec((S, tb, 1), lambda i, ml: (0, i, 0)),
        scratch_shapes=[
            pltpu.VMEM((S * tb, Tp), jnp.float32),   # emission table
            pltpu.VMEM((tb, Tp), jnp.float32),       # partition
            pltpu.VMEM((tb, Tp), jnp.float32),       # partition @ last valid step
            pltpu.VMEM((S, tb, Tp), jnp.int32),      # back pointers
            pltpu.VMEM((tb, 1), jnp.int32),          # backtrace pointer
        ],
    )

    vmem_limit = int(min(56 * 2**20,
                         max(32 * 2**20, 2 * _tile_vmem_bytes(tb, S, H, Tp))))

    out = pl.pallas_call(
        functools.partial(seqmodel_kernel, start_idx=START, stop_idx=STOP),
        out_shape=jax.ShapeDtypeStruct((S, B, 1), jnp.int32),
        grid_spec=grid_spec,
        compiler_params=pltpu.CompilerParams(
            dimension_semantics=("parallel",),
            vmem_limit_bytes=vmem_limit),
    )(tile_maxlen, lengths, hid, w, b, trans)

    # TODO(synk): output kept (S, tb, 1); a lane-dense (tb, S) layout needs a
    # per-step cross-lane relayout of the pointer, and output bytes are tiny.
    return jnp.transpose(out[:, :, 0])            # (B, S) int32 tag sequence


if __name__ == "__main__":
    # Small shapes implied by the forward pass: batch=2, seq=8, hidden=32.
    B, S, H = 2, 8, 32
    label_size = 5
    T = label_size + 2                            # tag size incl. START/STOP

    key = jax.random.PRNGKey(0)
    kw, kb, kt, kh = jax.random.split(key, 4)

    # hidden2tag = nn.Linear(H, label_size + 2): weight (T, H), bias (T)
    bound = 1.0 / math.sqrt(H)
    weight = jax.random.uniform(kw, (T, H), jnp.float32, -bound, bound)
    bias = jax.random.uniform(kb, (T,), jnp.float32, -bound, bound)

    # CRF transitions (T, T), with the standard NCRF++ constraints.
    transitions = 0.1 * jax.random.normal(kt, (T, T), jnp.float32)
    transitions = transitions.at[:, T - 2].set(-10000.0)   # nothing -> START
    transitions = transitions.at[T - 1, :].set(-10000.0)   # STOP -> nothing

    hidden = jax.random.normal(kh, (B, S, H), jnp.float32)
    # prefix mask: sequence 0 has length 8, sequence 1 has length 5
    mask = jnp.array([[1.0] * S,
                      [1.0] * 5 + [0.0] * (S - 5)], jnp.float32)

    # TODO(synk): neg_log_likelihood_loss / decode_nbest are not part of
    # forward() and are not implemented here.
    tag_seq = seqmodel_forward(hidden, mask, weight, bias, transitions)
    jax.block_until_ready(tag_seq)
    print("KERNEL_OK")
</pallas_src>

<mosaic_0001>
module attributes {stable_mosaic.version = 11 : i64} {
  func.func @seqmodel_kernel(%arg0: i32, %arg1: memref<1xi32, #tpu.memory_space<smem>>, %arg2: memref<2x1xi32, #tpu.memory_space<vmem>>, %arg3: memref<1x16x32xbf16, #tpu.memory_space<vmem>>, %arg4: memref<32x128xbf16, #tpu.memory_space<vmem>>, %arg5: memref<1x128xf32, #tpu.memory_space<vmem>>, %arg6: memref<128x128xf32, #tpu.memory_space<vmem>>, %arg7: memref<8x2x1xi32, #tpu.memory_space<vmem>>, %arg8: memref<16x128xf32, #tpu.memory_space<vmem>>, %arg9: memref<2x128xf32, #tpu.memory_space<vmem>>, %arg10: memref<2x128xf32, #tpu.memory_space<vmem>>, %arg11: memref<8x2x128xi32, #tpu.memory_space<vmem>>, %arg12: memref<2x1xi32, #tpu.memory_space<vmem>>) attributes {dimension_semantics = [#tpu.dimension_semantics<parallel>], iteration_bounds = array<i64: 1>, scalar_prefetch = 1 : i64, scratch_operands = 5 : i64, tpu.core_type = #tpu.core_type<tc>, window_params = [{transform_indices = @transform_0, window_bounds = array<i64: 2, 1>}, {transform_indices = @transform_1, window_bounds = array<i64: 1, 16, 32>}, {pipeline_mode = #tpu.pipeline_mode<synchronous>, transform_indices = @transform_2, window_bounds = array<i64: 32, 128>}, {pipeline_mode = #tpu.pipeline_mode<synchronous>, transform_indices = @transform_3, window_bounds = array<i64: 1, 128>}, {pipeline_mode = #tpu.pipeline_mode<synchronous>, transform_indices = @transform_4, window_bounds = array<i64: 128, 128>}, {transform_indices = @transform_5, window_bounds = array<i64: 8, 2, 1>}]} {
    %0 = arith.index_cast %arg0 : i32 to index
    %1 = memref.load %arg1[%0] : memref<1xi32, #tpu.memory_space<smem>>
    %c1_i32 = arith.constant 1 : i32
    %2 = arith.maxsi %1, %c1_i32 : i32
    %c0 = arith.constant 0 : index
    %c0_0 = arith.constant 0 : index
    %3 = vector.load %arg2[%c0, %c0_0] : memref<2x1xi32, #tpu.memory_space<vmem>>, vector<2x1xi32>
    %c0_1 = arith.constant 0 : index
    %c0_2 = arith.constant 0 : index
    %4 = vector.load %arg6[%c0_1, %c0_2] : memref<128x128xf32, #tpu.memory_space<vmem>>, vector<128x128xf32>
    %c0_3 = arith.constant 0 : index
    %c0_4 = arith.constant 0 : index
    %c0_5 = arith.constant 0 : index
    %5 = vector.load %arg3[%c0_3, %c0_4, %c0_5] : memref<1x16x32xbf16, #tpu.memory_space<vmem>>, vector<1x16x32xbf16>
    %6 = vector.shape_cast %5 : vector<1x16x32xbf16> to vector<16x32xbf16>
    %c0_6 = arith.constant 0 : index
    %c0_7 = arith.constant 0 : index
    %7 = vector.load %arg4[%c0_6, %c0_7] : memref<32x128xbf16, #tpu.memory_space<vmem>>, vector<32x128xbf16>
    %cst = arith.constant dense<0.000000e+00> : vector<16x128xf32>
    %8 = tpu.matmul %6, %7, %cst {dimension_numbers = #tpu.dot_dimension_numbers<[1], [0], [0], [1], [0, 0, 1, 1], [], []>} : vector<16x32xbf16>, vector<32x128xbf16>, vector<16x128xf32> -> vector<16x128xf32>
    %c0_8 = arith.constant 0 : index
    %c0_9 = arith.constant 0 : index
    %9 = vector.load %arg5[%c0_8, %c0_9] : memref<1x128xf32, #tpu.memory_space<vmem>>, vector<1x128xf32>
    %10 = vector.broadcast %9 : vector<1x128xf32> to vector<16x128xf32>
    %11 = arith.addf %8, %10 : vector<16x128xf32>
    %c0_10 = arith.constant 0 : index
    %c0_11 = arith.constant 0 : index
    %12 = vector.load %arg8[%c0_10, %c0_11] : memref<16x128xf32, #tpu.memory_space<vmem>>, vector<16x128xf32>
    tpu.vector_store %arg8[%c0_10, %c0_11], %11 {strides = array<i32>} : memref<16x128xf32, #tpu.memory_space<vmem>>, vector<16x128xf32>,
    %13 = tpu.iota {dimensions = array<i32: 1>} : vector<1x128x128xi32>
    %14 = tpu.iota {dimensions = array<i32: 1>} : vector<1x128xi32>
    %c0_i32 = arith.constant 0 : i32
    %15 = vector.broadcast %c0_i32 : i32 to vector<8x2x1xi32>
    %c0_12 = arith.constant 0 : index
    %c0_13 = arith.constant 0 : index
    %c0_14 = arith.constant 0 : index
    %16 = vector.load %arg7[%c0_12, %c0_13, %c0_14] : memref<8x2x1xi32, #tpu.memory_space<vmem>>, vector<8x2x1xi32>
    tpu.vector_store %arg7[%c0_12, %c0_13, %c0_14], %15 {strides = array<i32>} : memref<8x2x1xi32, #tpu.memory_space<vmem>>, vector<8x2x1xi32>,
    %c0_i32_15 = arith.constant 0 : i32
    %17 = vector.broadcast %c0_i32_15 : i32 to vector<2x128xi32>
    %c1_i32_16 = arith.constant 1 : i32
    %18 = arith.subi %2, %c1_i32_16 : i32
    %19 = arith.index_cast %18 : i32 to index
    %c0_17 = arith.constant 0 : index
    %c0_18 = arith.constant 0 : index
    %20 = vector.load %arg11[%19, %c0_17, %c0_18] : memref<8x2x128xi32, #tpu.memory_space<vmem>>, vector<1x2x128xi32>
    %21 = vector.shape_cast %20 : vector<1x2x128xi32> to vector<2x128xi32>
    %22 = vector.shape_cast %17 : vector<2x128xi32> to vector<1x2x128xi32>
    tpu.vector_store %arg11[%19, %c0_17, %c0_18], %22 {strides = array<i32>} : memref<8x2x128xi32, #tpu.memory_space<vmem>>, vector<1x2x128xi32>,
    %c0_19 = arith.constant 0 : index
    %c0_20 = arith.constant 0 : index
    %23 = vector.load %arg8[%c0_19, %c0_20] : memref<16x128xf32, #tpu.memory_space<vmem>>, vector<2x128xf32>
    %24 = vector.extract_strided_slice %4 {offsets = [5, 0], sizes = [1, 128], strides = [1, 1]} : vector<128x128xf32> to vector<1x128xf32>
    %25 = vector.broadcast %24 : vector<1x128xf32> to vector<2x128xf32>
    %26 = arith.addf %23, %25 : vector<2x128xf32>
    %c0_21 = arith.constant 0 : index
    %c0_22 = arith.constant 0 : index
    %27 = vector.load %arg9[%c0_21, %c0_22] : memref<2x128xf32, #tpu.memory_space<vmem>>, vector<2x128xf32>
    tpu.vector_store %arg9[%c0_21, %c0_22], %26 {strides = array<i32>} : memref<2x128xf32, #tpu.memory_space<vmem>>, vector<2x128xf32>,
    %c0_23 = arith.constant 0 : index
    %c0_24 = arith.constant 0 : index
    %28 = vector.load %arg10[%c0_23, %c0_24] : memref<2x128xf32, #tpu.memory_space<vmem>>, vector<2x128xf32>
    tpu.vector_store %arg10[%c0_23, %c0_24], %26 {strides = array<i32>} : memref<2x128xf32, #tpu.memory_space<vmem>>, vector<2x128xf32>,
    %c1_i32_25 = arith.constant 1 : i32
    %29 = arith.subi %2, %c1_i32_25 : i32
    %c1_i32_26 = arith.constant 1 : i32
    %c1_i32_27 = arith.constant 1 : i32
    %30 = arith.subi %c1_i32_26, %c1_i32_27 : i32
    %31 = arith.addi %29, %30 : i32
    %c1_i32_28 = arith.constant 1 : i32
    %32 = arith.divsi %31, %c1_i32_28 : i32
    %c1_i32_29 = arith.constant 1 : i32
    %c1_i32_30 = arith.constant 1 : i32
    %c0_i32_31 = arith.constant 0 : i32
    %33 = arith.subi %32, %c0_i32_31 : i32
    %34 = arith.addi %c0_i32_31, %33 : i32
    %c1_i32_32 = arith.constant 1 : i32
    scf.for %arg13 = %c0_i32_31 to %34 step %c1_i32_32  : i32 {
      %62 = arith.muli %arg13, %c1_i32_29 : i32
      %63 = arith.addi %c1_i32_30, %62 : i32
      %c0_49 = arith.constant 0 : index
      %c0_50 = arith.constant 0 : index
      %64 = vector.load %arg9[%c0_49, %c0_50] : memref<2x128xf32, #tpu.memory_space<vmem>>, vector<2x128xf32>
      %65 = vector.shape_cast %64 : vector<2x128xf32> to vector<2x128x1xf32>
      %66 = vector.shape_cast %4 : vector<128x128xf32> to vector<1x128x128xf32>
      %67 = vector.broadcast %65 : vector<2x128x1xf32> to vector<2x128x128xf32>
      %68 = vector.broadcast %66 : vector<1x128x128xf32> to vector<2x128x128xf32>
      %69 = arith.addf %67, %68 : vector<2x128x128xf32>
      %cst_51 = arith.constant dense<0xFF800000> : vector<2x128xf32>
      %70 = vector.multi_reduction <maximumf>, %69, %cst_51 [1] : vector<2x128x128xf32> to vector<2x128xf32>
      %71 = vector.shape_cast %70 : vector<2x128xf32> to vector<2x1x128xf32>
      %72 = vector.broadcast %71 : vector<2x1x128xf32> to vector<2x128x128xf32>
      %73 = arith.cmpf oeq, %69, %72 : vector<2x128x128xf32>
      %c128_i32_52 = arith.constant 128 : i32
      %74 = vector.shape_cast %13 : vector<1x128x128xi32> to vector<1x128x128xi32>
      %75 = vector.broadcast %74 : vector<1x128x128xi32> to vector<2x128x128xi32>
      %76 = vector.broadcast %c128_i32_52 : i32 to vector<2x128x128xi32>
      %77 = arith.select %73, %75, %76 : vector<2x128x128xi1>, vector<2x128x128xi32>
      %cst_53 = arith.constant dense<2147483647> : vector<2x128xi32>
      %78 = vector.multi_reduction <minsi>, %77, %cst_53 [1] : vector<2x128x128xi32> to vector<2x128xi32>
      %c2_i32 = arith.constant 2 : i32
      %79 = arith.muli %63, %c2_i32 : i32
      %80 = arith.index_cast %79 : i32 to index
      %c0_54 = arith.constant 0 : index
      %81 = vector.load %arg8[%80, %c0_54] : memref<16x128xf32, #tpu.memory_space<vmem>>, vector<2x128xf32>
      %82 = arith.addf %70, %81 : vector<2x128xf32>
      %c0_55 = arith.constant 0 : index
      %c0_56 = arith.constant 0 : index
      %83 = vector.load %arg9[%c0_55, %c0_56] : memref<2x128xf32, #tpu.memory_space<vmem>>, vector<2x128xf32>
      tpu.vector_store %arg9[%c0_55, %c0_56], %82 {strides = array<i32>} : memref<2x128xf32, #tpu.memory_space<vmem>>, vector<2x128xf32>,
      %c1_i32_57 = arith.constant 1 : i32
      %84 = vector.broadcast %c1_i32_57 : i32 to vector<2x1xi32>
      %85 = arith.subi %3, %84 : vector<2x1xi32>
      %86 = vector.broadcast %63 : i32 to vector<2x1xi32>
      %87 = arith.cmpi eq, %86, %85 : vector<2x1xi32>
      %c0_58 = arith.constant 0 : index
      %c0_59 = arith.constant 0 : index
      %88 = vector.load %arg10[%c0_58, %c0_59] : memref<2x128xf32, #tpu.memory_space<vmem>>, vector<2x128xf32>
      %89 = vector.shape_cast %87 : vector<2x1xi1> to vector<2x1xi1>
      %90 = vector.broadcast %89 : vector<2x1xi1> to vector<2x128xi1>
      %91 = arith.select %90, %82, %88 : vector<2x128xi1>, vector<2x128xf32>
      %c0_60 = arith.constant 0 : index
      %c0_61 = arith.constant 0 : index
      %92 = vector.load %arg10[%c0_60, %c0_61] : memref<2x128xf32, #tpu.memory_space<vmem>>, vector<2x128xf32>
      tpu.vector_store %arg10[%c0_60, %c0_61], %91 {strides = array<i32>} : memref<2x128xf32, #tpu.memory_space<vmem>>, vector<2x128xf32>,
      %93 = vector.broadcast %63 : i32 to vector<2x1xi32>
      %94 = arith.cmpi slt, %93, %3 : vector<2x1xi32>
      %c0_i32_62 = arith.constant 0 : i32
      %95 = vector.shape_cast %94 : vector<2x1xi1> to vector<2x1xi1>
      %96 = vector.broadcast %95 : vector<2x1xi1> to vector<2x128xi1>
      %97 = vector.broadcast %c0_i32_62 : i32 to vector<2x128xi32>
      %98 = arith.select %96, %78, %97 : vector<2x128xi1>, vector<2x128xi32>
      %c1_i32_63 = arith.constant 1 : i32
      %99 = arith.subi %63, %c1_i32_63 : i32
      %100 = arith.index_cast %99 : i32 to index
      %c0_64 = arith.constant 0 : index
      %c0_65 = arith.constant 0 : index
      %101 = vector.load %arg11[%100, %c0_64, %c0_65] : memref<8x2x128xi32, #tpu.memory_space<vmem>>, vector<1x2x128xi32>
      %102 = vector.shape_cast %101 : vector<1x2x128xi32> to vector<2x128xi32>
      %103 = vector.shape_cast %98 : vector<2x128xi32> to vector<1x2x128xi32>
      tpu.vector_store %arg11[%100, %c0_64, %c0_65], %103 {strides = array<i32>} : memref<8x2x128xi32, #tpu.memory_space<vmem>>, vector<1x2x128xi32>,
    }
    %c0_33 = arith.constant 0 : index
    %c0_34 = arith.constant 0 : index
    %35 = vector.load %arg10[%c0_33, %c0_34] : memref<2x128xf32, #tpu.memory_space<vmem>>, vector<2x128xf32>
    %36 = vector.shape_cast %35 : vector<2x128xf32> to vector<2x128x1xf32>
    %37 = vector.shape_cast %4 : vector<128x128xf32> to vector<1x128x128xf32>
    %38 = vector.broadcast %36 : vector<2x128x1xf32> to vector<2x128x128xf32>
    %39 = vector.broadcast %37 : vector<1x128x128xf32> to vector<2x128x128xf32>
    %40 = arith.addf %38, %39 : vector<2x128x128xf32>
    %cst_35 = arith.constant dense<0xFF800000> : vector<2x128xf32>
    %41 = vector.multi_reduction <maximumf>, %40, %cst_35 [1] : vector<2x128x128xf32> to vector<2x128xf32>
    %42 = vector.shape_cast %41 : vector<2x128xf32> to vector<2x1x128xf32>
    %43 = vector.broadcast %42 : vector<2x1x128xf32> to vector<2x128x128xf32>
    %44 = arith.cmpf oeq, %40, %43 : vector<2x128x128xf32>
    %c128_i32 = arith.constant 128 : i32
    %45 = vector.shape_cast %13 : vector<1x128x128xi32> to vector<1x128x128xi32>
    %46 = vector.broadcast %45 : vector<1x128x128xi32> to vector<2x128x128xi32>
    %47 = vector.broadcast %c128_i32 : i32 to vector<2x128x128xi32>
    %48 = arith.select %44, %46, %47 : vector<2x128x128xi1>, vector<2x128x128xi32>
    %cst_36 = arith.constant dense<2147483647> : vector<2x128xi32>
    %49 = vector.multi_reduction <minsi>, %48, %cst_36 [1] : vector<2x128x128xi32> to vector<2x128xi32>
    %50 = vector.extract_strided_slice %49 {offsets = [0, 6], sizes = [2, 1], strides = [1, 1]} : vector<2x128xi32> to vector<2x1xi32>
    %c0_37 = arith.constant 0 : index
    %c0_38 = arith.constant 0 : index
    %51 = vector.load %arg12[%c0_37, %c0_38] : memref<2x1xi32, #tpu.memory_space<vmem>>, vector<2x1xi32>
    tpu.vector_store %arg12[%c0_37, %c0_38], %50 {strides = array<i32>} : memref<2x1xi32, #tpu.memory_space<vmem>>, vector<2x1xi32>,
    %c7 = arith.constant 7 : index
    %c0_39 = arith.constant 0 : index
    %c0_40 = arith.constant 0 : index
    %52 = vector.load %arg7[%c7, %c0_39, %c0_40] : memref<8x2x1xi32, #tpu.memory_space<vmem>>, vector<1x2x1xi32>
    %53 = vector.shape_cast %52 : vector<1x2x1xi32> to vector<2x1xi32>
    %54 = vector.shape_cast %50 : vector<2x1xi32> to vector<1x2x1xi32>
    tpu.vector_store %arg7[%c7, %c0_39, %c0_40], %54 {strides = array<i32>} : memref<8x2x1xi32, #tpu.memory_space<vmem>>, vector<1x2x1xi32>,
    %c7_i32 = arith.constant 7 : i32
    %55 = arith.minsi %2, %c7_i32 : i32
    %c0_i32_41 = arith.constant 0 : i32
    %56 = arith.subi %55, %c0_i32_41 : i32
    %c1_i32_42 = arith.constant 1 : i32
    %c1_i32_43 = arith.constant 1 : i32
    %57 = arith.subi %c1_i32_42, %c1_i32_43 : i32
    %58 = arith.addi %56, %57 : i32
    %c1_i32_44 = arith.constant 1 : i32
    %59 = arith.divsi %58, %c1_i32_44 : i32
    %c1_i32_45 = arith.constant 1 : i32
    %c0_i32_46 = arith.constant 0 : i32
    %c0_i32_47 = arith.constant 0 : i32
    %60 = arith.subi %59, %c0_i32_47 : i32
    %61 = arith.addi %c0_i32_47, %60 : i32
    %c1_i32_48 = arith.constant 1 : i32
    scf.for %arg13 = %c0_i32_47 to %61 step %c1_i32_48  : i32 {
      %62 = arith.muli %arg13, %c1_i32_45 : i32
      %63 = arith.addi %c0_i32_46, %62 : i32
      %c1_i32_49 = arith.constant 1 : i32
      %64 = arith.subi %55, %c1_i32_49 : i32
      %65 = arith.subi %64, %63 : i32
      %66 = arith.index_cast %65 : i32 to index
      %c0_50 = arith.constant 0 : index
      %c0_51 = arith.constant 0 : index
      %67 = vector.load %arg11[%66, %c0_50, %c0_51] : memref<8x2x128xi32, #tpu.memory_space<vmem>>, vector<1x2x128xi32>
      %68 = vector.shape_cast %67 : vector<1x2x128xi32> to vector<2x128xi32>
      %c0_52 = arith.constant 0 : index
      %c0_53 = arith.constant 0 : index
      %69 = vector.load %arg12[%c0_52, %c0_53] : memref<2x1xi32, #tpu.memory_space<vmem>>, vector<2x1xi32>
      %70 = vector.broadcast %14 : vector<1x128xi32> to vector<2x128xi32>
      %71 = vector.broadcast %69 : vector<2x1xi32> to vector<2x128xi32>
      %72 = arith.cmpi eq, %70, %71 : vector<2x128xi32>
      %c0_i32_54 = arith.constant 0 : i32
      %73 = vector.broadcast %c0_i32_54 : i32 to vector<2x128xi32>
      %74 = arith.select %72, %68, %73 : vector<2x128xi1>, vector<2x128xi32>
      %cst_55 = arith.constant dense<0> : vector<2xi32>
      %75 = vector.multi_reduction <add>, %74, %cst_55 [1] : vector<2x128xi32> to vector<2xi32>
      %76 = vector.shape_cast %75 : vector<2xi32> to vector<2x1xi32>
      %c1_i32_56 = arith.constant 1 : i32
      %77 = vector.broadcast %c1_i32_56 : i32 to vector<2x1xi32>
      %78 = arith.subi %3, %77 : vector<2x1xi32>
      %79 = vector.broadcast %65 : i32 to vector<2x1xi32>
      %80 = arith.cmpi eq, %79, %78 : vector<2x1xi32>
      %81 = arith.select %80, %50, %76 : vector<2x1xi1>, vector<2x1xi32>
      %c0_57 = arith.constant 0 : index
      %c0_58 = arith.constant 0 : index
      %82 = vector.load %arg12[%c0_57, %c0_58] : memref<2x1xi32, #tpu.memory_space<vmem>>, vector<2x1xi32>
      tpu.vector_store %arg12[%c0_57, %c0_58], %81 {strides = array<i32>} : memref<2x1xi32, #tpu.memory_space<vmem>>, vector<2x1xi32>,
      %83 = arith.index_cast %65 : i32 to index
      %c0_59 = arith.constant 0 : index
      %c0_60 = arith.constant 0 : index
      %84 = vector.load %arg7[%83, %c0_59, %c0_60] : memref<8x2x1xi32, #tpu.memory_space<vmem>>, vector<1x2x1xi32>
      %85 = vector.shape_cast %84 : vector<1x2x1xi32> to vector<2x1xi32>
      %86 = vector.shape_cast %81 : vector<2x1xi32> to vector<1x2x1xi32>
      tpu.vector_store %arg7[%83, %c0_59, %c0_60], %86 {strides = array<i32>} : memref<8x2x1xi32, #tpu.memory_space<vmem>>, vector<1x2x1xi32>,
    }
    return
  }
  func.func @transform_0(%arg0: i32, %arg1: memref<1xi32, #tpu.memory_space<smem>>) -> (i32, i32) {
    %c0_i32 = arith.constant 0 : i32
    %c0_i32_0 = arith.constant 0 : i32
    return %arg0, %c0_i32 : i32, i32
  }
  func.func @transform_1(%arg0: i32, %arg1: memref<1xi32, #tpu.memory_space<smem>>) -> (i32, i32, i32) {
    %c0_i32 = arith.constant 0 : i32
    %c0_i32_0 = arith.constant 0 : i32
    %c0_i32_1 = arith.constant 0 : i32
    return %arg0, %c0_i32, %c0_i32_0 : i32, i32, i32
  }
  func.func @transform_2(%arg0: i32, %arg1: memref<1xi32, #tpu.memory_space<smem>>) -> (i32, i32) {
    %c0_i32 = arith.constant 0 : i32
    %c0_i32_0 = arith.constant 0 : i32
    %c0_i32_1 = arith.constant 0 : i32
    return %c0_i32, %c0_i32_0 : i32, i32
  }
  func.func @transform_3(%arg0: i32, %arg1: memref<1xi32, #tpu.memory_space<smem>>) -> (i32, i32) {
    %c0_i32 = arith.constant 0 : i32
    %c0_i32_0 = arith.constant 0 : i32
    %c0_i32_1 = arith.constant 0 : i32
    return %c0_i32, %c0_i32_0 : i32, i32
  }
  func.func @transform_4(%arg0: i32, %arg1: memref<1xi32, #tpu.memory_space<smem>>) -> (i32, i32) {
    %c0_i32 = arith.constant 0 : i32
    %c0_i32_0 = arith.constant 0 : i32
    %c0_i32_1 = arith.constant 0 : i32
    return %c0_i32, %c0_i32_0 : i32, i32
  }
  func.func @transform_5(%arg0: i32, %arg1: memref<1xi32, #tpu.memory_space<smem>>) -> (i32, i32, i32) {
    %c0_i32 = arith.constant 0 : i32
    %c0_i32_0 = arith.constant 0 : i32
    %c0_i32_1 = arith.constant 0 : i32
    return %c0_i32, %arg0, %c0_i32_0 : i32, i32, i32
  }
}

</mosaic_0001>

<llo_original>
// kernel: seqmodel_forward.1
$region0: #{seqmodel_forward.1}
  #allocation0 [shape = 'u32[]', space=smem, size = 0x4, offset = 0x4, fixed_abs, tag = 'smem constant byte address 0x4 - core index']
  #allocation1 [shape = 'u32[144,128]{1,0:T(1,128)}', space=vmem, size = 0x12000, scoped, tag = 'internal scratch']
  #allocation2 [shape = 'f32[16,128]{1,0:T(8,128)}', space=vmem, size = 0x2000, scoped, tag = 'scratch operand']
  #allocation3 [shape = 'f32[2,128]{1,0:T(2,128)}', space=vmem, size = 0x400, scoped, tag = 'scratch operand']
  #allocation4 [shape = 'f32[2,128]{1,0:T(2,128)}', space=vmem, size = 0x400, scoped, tag = 'scratch operand']
  #allocation5 [shape = 's32[8,2,128]{2,1,0:T(2,128)}', space=vmem, size = 0x2000, scoped, tag = 'scratch operand']
  #allocation6 [shape = 's32[2,1]{1,0:T(2,128)}', space=vmem, size = 0x400, scoped, tag = 'scratch operand']
  #allocation7 [shape = 's32[1]{0}', space=sflag, size = 0x4, scoped, tag = 'scoped memory for seqmodel_forward.1']
  #allocation8 [shape = 's32[1]{0:T(128)S(6)}', space=smem, size = 0x200, scoped, tag = 'prefetched SMEM operand 0']
  %s0 = inlined_call_operand.<no memory space> [shape: s32[1], index: 0, kind: input, shape index: {}]
  %s1 = inlined_call_operand.vmem [shape: s32[2,1], index: 1, kind: input, shape index: {}]
  %s2 = inlined_call_operand.vmem [shape: bf16[1,16,32], index: 2, kind: input, shape index: {}]
  %s3 = inlined_call_operand.vmem [shape: bf16[32,128], index: 3, kind: input, shape index: {}]
  %s4 = inlined_call_operand.vmem [shape: f32[1,128], index: 4, kind: input, shape index: {}]
  %s5 = inlined_call_operand.vmem [shape: f32[128,128], index: 5, kind: input, shape index: {}]
  %s6 = inlined_call_operand.vmem [shape: s32[8,2,1], index: 6, kind: output, shape index: {}]
  %s7 = sld [smem:[#allocation0]]
  $region44: #{seqmodel_forward.1} parent=0
    _
  %s9 = ssub.s32 1, %s7
  %s10 = scalar_select 0, %s9, %s7
  %11 = sst [smem:[#allocation8]] %s0
  // Predicated region
  $region2: #{seqmodel_forward.1} parent=0 // pred_check
    _
  $region3: #{seqmodel_forward.1} parent=0 // pred_check_branch
    %13 = sbr.rel (0) target = $region5
  $region4: #{seqmodel_forward.1} parent=0 // pred_region
    _
  $region5: #{seqmodel_forward.1} parent=0 // pred_fallthru
    _
  // Predicated region
  $region6: #{seqmodel_forward.1} parent=0 // pred_check
    _
  $region7: #{seqmodel_forward.1} parent=0 // pred_check_branch
    %15 = sbr.rel (0) target = $region9
  $region8: #{seqmodel_forward.1} parent=0 // pred_region
    _
  $region9: #{seqmodel_forward.1} parent=0 // pred_fallthru
    _
  // Predicated region
  $region10: #{seqmodel_forward.1} parent=0 // pred_check
    _
  $region11: #{seqmodel_forward.1} parent=0 // pred_check_branch
    %17 = sbr.rel (0) target = $region13
  $region12: #{seqmodel_forward.1} parent=0 // pred_region
    _
  $region13: #{seqmodel_forward.1} parent=0 // pred_fallthru
    _
  // Predicated region
  $region14: #{seqmodel_forward.1} parent=0 // pred_check
    _
  $region15: #{seqmodel_forward.1} parent=0 // pred_check_branch
    %19 = sbr.rel (0) target = $region17
  $region16: #{seqmodel_forward.1} parent=0 // pred_region
    _
  $region17: #{seqmodel_forward.1} parent=0 // pred_fallthru
    _
  // Predicated region
  $region18: #{seqmodel_forward.1} parent=0 // pred_check
    _
  $region19: #{seqmodel_forward.1} parent=0 // pred_check_branch
    %21 = sbr.rel (0) target = $region21
  $region20: #{seqmodel_forward.1} parent=0 // pred_region
    _
  $region21: #{seqmodel_forward.1} parent=0 // pred_fallthru
    _
  %s23 = sld [smem:[#allocation8]]
  %p24 = scmp.gt.s32.totalorder %s23, 1
  %s25 = scalar_select %p24, %s23, 1
  %v26 = vld [vmem:[%s1] sm:$0x3]
  %v27 = vld [vmem:[%s5] sm:$0xff]
  %v28 = vld [vmem:[%s5 + $0x8] sm:$0xff]
  %v29 = vld [vmem:[%s5 + $0x10] sm:$0xff]
  %v30 = vld [vmem:[%s5 + $0x18] sm:$0xff]
  %v31 = vld [vmem:[%s5 + $0x20] sm:$0xff]
  %v32 = vld [vmem:[%s5 + $0x28] sm:$0xff]
  %v33 = vld [vmem:[%s5 + $0x30] sm:$0xff]
  %v34 = vld [vmem:[%s5 + $0x38] sm:$0xff]
  %v35 = vld [vmem:[%s5 + $0x40] sm:$0xff]
  %v36 = vld [vmem:[%s5 + $0x48] sm:$0xff]
  %v37 = vld [vmem:[%s5 + $0x50] sm:$0xff]
  %v38 = vld [vmem:[%s5 + $0x58] sm:$0xff]
  %v39 = vld [vmem:[%s5 + $0x60] sm:$0xff]
  %v40 = vld [vmem:[%s5 + $0x68] sm:$0xff]
  %v41 = vld [vmem:[%s5 + $0x70] sm:$0xff]
  %v42 = vld [vmem:[%s5 + $0x78] sm:$0xff]
  %v43 = vld [vmem:[%s2] sm:$0xf]
  %v44 = vld [vmem:[%s2 + $0x4] sm:$0xf]
  %v45 = vld [vmem:[%s3] sm:$0xf]
  %v46 = vld [vmem:[%s3 + $0x4] sm:$0xf]
  %v47 = vld [vmem:[%s3 + $0x8] sm:$0xf]
  %v48 = vld [vmem:[%s3 + $0xc] sm:$0xf]
  %v49 = vld [vmem:[%s4] sm:$0x1]
  %v51 = vlaneseq
  %v52 = vshrl.u32 %v51, 7
  %v53 = vsub.s32 0, %v52
  %v54 = vrot.slane %v49, %v53
  %v58 = vunpack.c.l.b16 %v43
  %v59 = vunpack.c.l.b16 %v44
  %v60 = vpack.c.b16 %v59, %v58
  %v65 = vunpack.c.l.b16 %v45
  %v66 = vunpack.c.l.b16 %v46
  %v67 = vunpack.c.l.b16 %v47
  %v68 = vunpack.c.l.b16 %v48
  %v69 = vpack.c.b16 %v66, %v65
  %v70 = vpack.c.b16 %v68, %v67
  %vm73 = vcmask 261120
  %v75 = vsel %vm73, %v60, 0
  %77 = vmatprep.subr.bf16.mxu0 0
  %78 = vmatpush1.bf16.msra.mxu0 0
  %79 = vmatprep.subr.bf16.mxu0 0
  %80 = vmatpush1.bf16.msra.mxu0 0
  %81 = vmatprep.subr.bf16.mxu0 0
  %82 = vmatpush1.bf16.msra.mxu0 0
  %83 = vmatprep.subr.bf16.mxu0 0
  %84 = vmatpush1.bf16.msra.mxu0 0
  %85 = vmatprep.subr.bf16.mxu0 0
  %86 = vmatpush1.bf16.msra.mxu0 0
  %87 = vmatprep.subr.bf16.mxu0 0
  %88 = vmatpush1.bf16.msra.mxu0 0
  %89 = vmatprep.subr.bf16.mxu0 0
  %90 = vmatpush1.bf16.msra.mxu0 %v70
  %91 = vmatprep.subr.bf16.mxu0 0
  %92 = vmatpush1.bf16.msra.mxu0 %v69
  %93 = vmatprep.subr.bf16.mxu0 0
  %94 = vmatpush2.bf16.msra.mxu0 0
  %95 = vmatprep.subr.bf16.mxu0 0
  %96 = vmatpush2.bf16.msra.mxu0 0
  %97 = vmatprep.subr.bf16.mxu0 0
  %98 = vmatpush2.bf16.msra.mxu0 0
  %99 = vmatprep.subr.bf16.mxu0 0
  %100 = vmatpush2.bf16.msra.mxu0 0
  %101 = vmatprep.subr.bf16.mxu0 0
  %102 = vmatpush2.bf16.msra.mxu0 0
  %103 = vmatprep.subr.bf16.mxu0 0
  %104 = vmatpush2.bf16.msra.mxu0 0
  %105 = vmatprep.subr.bf16.mxu0 0
  %106 = vmatpush2.bf16.msra.mxu0 0
  %107 = vmatprep.subr.bf16.mxu0 0
  %108 = vmatpush2.bf16.msra.mxu0 0
  %109 = vmatprep.mubr.bf16.mxu0 0
  %110 = vmatmul.mubr.bf16.gmra.mxu0 %v75
  %v111 = vpop.f32.mrf.mxu0
  %v112 = vadd.f32 %v54, %v111
  %v113 = vpop.f32.mrf.mxu0
  %v114 = vpop.f32.mrf.mxu0
  %v115 = vadd.f32 %v54, %v114
  %v116 = vpop.f32.mrf.mxu0
  %117 = vdwg.mxu0
  %118 = vst [vmem:[#allocation2] sm:$0xff] %v112
  %119 = vst [vmem:[#allocation2 + $0x8] sm:$0xff] %v115
  %v120 = vlaneseq
  %v121 = vshrl.u32 %v120, 7
  %v122 = vadd.s32 %v121, 8
  %v123 = vadd.s32 %v121, 16
  %v124 = vadd.s32 %v121, 24
  %v125 = vadd.s32 %v121, 32
  %v126 = vadd.s32 %v121, 40
  %v127 = vadd.s32 %v121, 48
  %v128 = vadd.s32 %v121, 56
  %v129 = vadd.s32 %v121, 64
  %v130 = vadd.s32 %v121, 72
  %v131 = vadd.s32 %v121, 80
  %v132 = vadd.s32 %v121, 88
  %v133 = vadd.s32 %v121, 96
  %v134 = vadd.s32 %v121, 104
  %v135 = vadd.s32 %v121, 112
  %v136 = vadd.s32 %v121, 120
  %v137 = vlaneseq
  %v138 = vand.u32 %v137, 127
  %vm139 = vcmask 1024
  %140 = vst.msk [vmem:[%s6] sm:$0x3] %vm139, 0
  %141 = vst.msk [vmem:[%s6 + $0x2] sm:$0x3] %vm139, 0
  %142 = vst.msk [vmem:[%s6 + $0x4] sm:$0x3] %vm139, 0
  %143 = vst.msk [vmem:[%s6 + $0x6] sm:$0x3] %vm139, 0
  %144 = vst.msk [vmem:[%s6 + $0x8] sm:$0x3] %vm139, 0
  %145 = vst.msk [vmem:[%s6 + $0xa] sm:$0x3] %vm139, 0
  %146 = vst.msk [vmem:[%s6 + $0xc] sm:$0x3] %vm139, 0
  %147 = vst.msk [vmem:[%s6 + $0xe] sm:$0x3] %vm139, 0
  %s148 = ssub.s32 %s25, 1
  %s149 = smul.u32 %s148, 2
  %s150 = scalar_lea.vmem [#allocation5], %s149
  %151 = vst [vmem:[%s150] sm:$0x3] 0
  %v152 = vld [vmem:[#allocation2] sm:$0x3]
  %v153 = vlaneseq
  %v154 = vshrl.u32 %v153, 7
  %v155 = vsub.s32 5, %v154
  %v156 = vrot.slane %v27, %v155
  %v157 = vadd.f32 %v152, %v156
  %158 = vst [vmem:[#allocation3] sm:$0x3] %v157
  %159 = vst [vmem:[#allocation4] sm:$0x3] %v157
  // While loop
  $region22: #{seqmodel_forward.1} parent=0 // loop_pre_header
    _
  $region23: #{seqmodel_forward.1} parent=0 // loop_header
    %s161 = sphi 0, %s163
    %p162 = scmp.ge.s32.totalorder %s161, %s148
  $region24: #{seqmodel_forward.1} parent=0 // loop_header_branch
    %165 = sbr.rel (%p162) target = $region28
  $region25: #{seqmodel_forward.1} parent=0 // loop_body
    %s166 = sadd.s32 %s161, 1
    %v167 = vld [vmem:[#allocation3] sm:$0x3]
    %v168 = vlaneseq
    %v169 = vshrl.u32 %v168, 7
    %v170 = vsub.s32 0, %v169
    %v171 = vrot.slane %v167, %v170
    %173 = vbcast.lane.b32.xlu0 %v171, 256
    %v174 = vpop.permute.xlu0 %173
    %s176 = sor.u32 256, 8
    %177 = vbcast.lane.b32.xlu0 %v171, %s176
    %v178 = vpop.permute.xlu0 %177
    %s180 = sor.u32 256, 16
    %181 = vbcast.lane.b32.xlu0 %v171, %s180
    %v182 = vpop.permute.xlu0 %181
    %s184 = sor.u32 256, 24
    %185 = vbcast.lane.b32.xlu0 %v171, %s184
    %v186 = vpop.permute.xlu0 %185
    %s188 = sor.u32 256, 32
    %189 = vbcast.lane.b32.xlu0 %v171, %s188
    %v190 = vpop.permute.xlu0 %189
    %s192 = sor.u32 256, 40
    %193 = vbcast.lane.b32.xlu0 %v171, %s192
    %v194 = vpop.permute.xlu0 %193
    %s196 = sor.u32 256, 48
    %197 = vbcast.lane.b32.xlu0 %v171, %s196
    %v198 = vpop.permute.xlu0 %197
    %s200 = sor.u32 256, 56
    %201 = vbcast.lane.b32.xlu0 %v171, %s200
    %v202 = vpop.permute.xlu0 %201
    %s204 = sor.u32 256, 64
    %205 = vbcast.lane.b32.xlu0 %v171, %s204
    %v206 = vpop.permute.xlu0 %205
    %s208 = sor.u32 256, 72
    %209 = vbcast.lane.b32.xlu0 %v171, %s208
    %v210 = vpop.permute.xlu0 %209
    %s212 = sor.u32 256, 80
    %213 = vbcast.lane.b32.xlu0 %v171, %s212
    %v214 = vpop.permute.xlu0 %213
    %s216 = sor.u32 256, 88
    %217 = vbcast.lane.b32.xlu0 %v171, %s216
    %v218 = vpop.permute.xlu0 %217
    %s220 = sor.u32 256, 96
    %221 = vbcast.lane.b32.xlu0 %v171, %s220
    %v222 = vpop.permute.xlu0 %221
    %s224 = sor.u32 256, 104
    %225 = vbcast.lane.b32.xlu0 %v171, %s224
    %v226 = vpop.permute.xlu0 %225
    %s228 = sor.u32 256, 112
    %229 = vbcast.lane.b32.xlu0 %v171, %s228
    %v230 = vpop.permute.xlu0 %229
    %s232 = sor.u32 256, 120
    %233 = vbcast.lane.b32.xlu0 %v171, %s232
    %v234 = vpop.permute.xlu0 %233
    %v235 = vlaneseq
    %v236 = vshrl.u32 %v235, 7
    %v237 = vsub.s32 1, %v236
    %v238 = vrot.slane %v167, %v237
    %240 = vbcast.lane.b32.xlu0 %v238, 256
    %v241 = vpop.permute.xlu0 %240
    %s243 = sor.u32 256, 8
    %244 = vbcast.lane.b32.xlu0 %v238, %s243
    %v245 = vpop.permute.xlu0 %244
    %s247 = sor.u32 256, 16
    %248 = vbcast.lane.b32.xlu0 %v238, %s247
    %v249 = vpop.permute.xlu0 %248
    %s251 = sor.u32 256, 24
    %252 = vbcast.lane.b32.xlu0 %v238, %s251
    %v253 = vpop.permute.xlu0 %252
    %s255 = sor.u32 256, 32
    %256 = vbcast.lane.b32.xlu0 %v238, %s255
    %v257 = vpop.permute.xlu0 %256
    %s259 = sor.u32 256, 40
    %260 = vbcast.lane.b32.xlu0 %v238, %s259
    %v261 = vpop.permute.xlu0 %260
    %s263 = sor.u32 256, 48
    %264 = vbcast.lane.b32.xlu0 %v238, %s263
    %v265 = vpop.permute.xlu0 %264
    %s267 = sor.u32 256, 56
    %268 = vbcast.lane.b32.xlu0 %v238, %s267
    %v269 = vpop.permute.xlu0 %268
    %s271 = sor.u32 256, 64
    %272 = vbcast.lane.b32.xlu0 %v238, %s271
    %v273 = vpop.permute.xlu0 %272
    %s275 = sor.u32 256, 72
    %276 = vbcast.lane.b32.xlu0 %v238, %s275
    %v277 = vpop.permute.xlu0 %276
    %s279 = sor.u32 256, 80
    %280 = vbcast.lane.b32.xlu0 %v238, %s279
    %v281 = vpop.permute.xlu0 %280
    %s283 = sor.u32 256, 88
    %284 = vbcast.lane.b32.xlu0 %v238, %s283
    %v285 = vpop.permute.xlu0 %284
    %s287 = sor.u32 256, 96
    %288 = vbcast.lane.b32.xlu0 %v238, %s287
    %v289 = vpop.permute.xlu0 %288
    %s291 = sor.u32 256, 104
    %292 = vbcast.lane.b32.xlu0 %v238, %s291
    %v293 = vpop.permute.xlu0 %292
    %s295 = sor.u32 256, 112
    %296 = vbcast.lane.b32.xlu0 %v238, %s295
    %v297 = vpop.permute.xlu0 %296
    %s299 = sor.u32 256, 120
    %300 = vbcast.lane.b32.xlu0 %v238, %s299
    %v301 = vpop.permute.xlu0 %300
    %v302 = vadd.f32 %v174, %v27
    %v303 = vadd.f32 %v178, %v28
    %v304 = vadd.f32 %v182, %v29
    %v305 = vadd.f32 %v186, %v30
    %v306 = vadd.f32 %v190, %v31
    %v307 = vadd.f32 %v194, %v32
    %v308 = vadd.f32 %v198, %v33
    %v309 = vadd.f32 %v202, %v34
    %v310 = vadd.f32 %v206, %v35
    %v311 = vadd.f32 %v210, %v36
    %v312 = vadd.f32 %v214, %v37
    %v313 = vadd.f32 %v218, %v38
    %v314 = vadd.f32 %v222, %v39
    %v315 = vadd.f32 %v226, %v40
    %v316 = vadd.f32 %v230, %v41
    %v317 = vadd.f32 %v234, %v42
    %v318 = vadd.f32 %v241, %v27
    %v319 = vadd.f32 %v245, %v28
    %v320 = vadd.f32 %v249, %v29
    %v321 = vadd.f32 %v253, %v30
    %v322 = vadd.f32 %v257, %v31
    %v323 = vadd.f32 %v261, %v32
    %v324 = vadd.f32 %v265, %v33
    %v325 = vadd.f32 %v269, %v34
    %v326 = vadd.f32 %v273, %v35
    %v327 = vadd.f32 %v277, %v36
    %v328 = vadd.f32 %v281, %v37
    %v329 = vadd.f32 %v285, %v38
    %v330 = vadd.f32 %v289, %v39
    %v331 = vadd.f32 %v293, %v40
    %v332 = vadd.f32 %v297, %v41
    %v333 = vadd.f32 %v301, %v42
    %v334 = vmax.f32 %v302, %v304
    %v335 = vmax.f32 %v303, %v305
    %v336 = vmax.f32 %v334, %v306
    %v337 = vmax.f32 %v335, %v307
    %v338 = vmax.f32 %v336, %v308
    %v339 = vmax.f32 %v337, %v309
    %v340 = vmax.f32 %v338, %v310
    %v341 = vmax.f32 %v339, %v311
    %v342 = vmax.f32 %v340, %v312
    %v343 = vmax.f32 %v341, %v313
    %v344 = vmax.f32 %v342, %v314
    %v345 = vmax.f32 %v343, %v315
    %v346 = vmax.f32 %v344, %v316
    %v347 = vmax.f32 %v345, %v317
    %v348 = vmax.f32 %v346, %v347
    %v349 = vrot.slane %v348, 4
    %v350 = vmax.f32 %v348, %v349
    %v351 = vrot.slane %v350, 2
    %v352 = vmax.f32 %v350, %v351
    %v353 = vrot.slane %v352, 1
    %v354 = vmax.f32 %v352, %v353
    %v355 = vmax.f32 %v318, %v320
    %v356 = vmax.f32 %v319, %v321
    %v357 = vmax.f32 %v355, %v322
    %v358 = vmax.f32 %v356, %v323
    %v359 = vmax.f32 %v357, %v324
    %v360 = vmax.f32 %v358, %v325
    %v361 = vmax.f32 %v359, %v326
    %v362 = vmax.f32 %v360, %v327
    %v363 = vmax.f32 %v361, %v328
    %v364 = vmax.f32 %v362, %v329
    %v365 = vmax.f32 %v363, %v330
    %v366 = vmax.f32 %v364, %v331
    %v367 = vmax.f32 %v365, %v332
    %v368 = vmax.f32 %v366, %v333
    %v369 = vmax.f32 %v367, %v368
    %v370 = vrot.slane %v369, 4
    %v371 = vmax.f32 %v369, %v370
    %v372 = vrot.slane %v371, 2
    %v373 = vmax.f32 %v371, %v372
    %v374 = vrot.slane %v373, 1
    %v375 = vmax.f32 %v373, %v374
    %vm376 = vcmp.eq.f32.partialorder %v302, %v354
    %vm377 = vcmp.eq.f32.partialorder %v303, %v354
    %vm378 = vcmp.eq.f32.partialorder %v304, %v354
    %vm379 = vcmp.eq.f32.partialorder %v305, %v354
    %vm380 = vcmp.eq.f32.partialorder %v306, %v354
    %vm381 = vcmp.eq.f32.partialorder %v307, %v354
    %vm382 = vcmp.eq.f32.partialorder %v308, %v354
    %vm383 = vcmp.eq.f32.partialorder %v309, %v354
    %vm384 = vcmp.eq.f32.partialorder %v310, %v354
    %vm385 = vcmp.eq.f32.partialorder %v311, %v354
    %vm386 = vcmp.eq.f32.partialorder %v312, %v354
    %vm387 = vcmp.eq.f32.partialorder %v313, %v354
    %vm388 = vcmp.eq.f32.partialorder %v314, %v354
    %vm389 = vcmp.eq.f32.partialorder %v315, %v354
    %vm390 = vcmp.eq.f32.partialorder %v316, %v354
    %vm391 = vcmp.eq.f32.partialorder %v317, %v354
    %vm392 = vcmp.eq.f32.partialorder %v318, %v375
    %vm393 = vcmp.eq.f32.partialorder %v319, %v375
    %vm394 = vcmp.eq.f32.partialorder %v320, %v375
    %vm395 = vcmp.eq.f32.partialorder %v321, %v375
    %vm396 = vcmp.eq.f32.partialorder %v322, %v375
    %vm397 = vcmp.eq.f32.partialorder %v323, %v375
    %vm398 = vcmp.eq.f32.partialorder %v324, %v375
    %vm399 = vcmp.eq.f32.partialorder %v325, %v375
    %vm400 = vcmp.eq.f32.partialorder %v326, %v375
    %vm401 = vcmp.eq.f32.partialorder %v327, %v375
    %vm402 = vcmp.eq.f32.partialorder %v328, %v375
    %vm403 = vcmp.eq.f32.partialorder %v329, %v375
    %vm404 = vcmp.eq.f32.partialorder %v330, %v375
    %vm405 = vcmp.eq.f32.partialorder %v331, %v375
    %vm406 = vcmp.eq.f32.partialorder %v332, %v375
    %vm407 = vcmp.eq.f32.partialorder %v333, %v375
    %v408 = vsel %vm376, %v121, 128
    %v409 = vsel %vm377, %v122, 128
    %v410 = vsel %vm378, %v123, 128
    %v411 = vsel %vm379, %v124, 128
    %v412 = vsel %vm380, %v125, 128
    %v413 = vsel %vm381, %v126, 128
    %v414 = vsel %vm382, %v127, 128
    %v415 = vsel %vm383, %v128, 128
    %v416 = vsel %vm384, %v129, 128
    %v417 = vsel %vm385, %v130, 128
    %v418 = vsel %vm386, %v131, 128
    %v419 = vsel %vm387, %v132, 128
    %v420 = vsel %vm388, %v133, 128
    %v421 = vsel %vm389, %v134, 128
    %v422 = vsel %vm390, %v135, 128
    %v423 = vsel %vm391, %v136, 128
    %v424 = vsel %vm392, %v121, 128
    %v425 = vsel %vm393, %v122, 128
    %v426 = vsel %vm394, %v123, 128
    %v427 = vsel %vm395, %v124, 128
    %v428 = vsel %vm396, %v125, 128
    %v429 = vsel %vm397, %v126, 128
    %v430 = vsel %vm398, %v127, 128
    %v431 = vsel %vm399, %v128, 128
    %v432 = vsel %vm400, %v129, 128
    %v433 = vsel %vm401, %v130, 128
    %v434 = vsel %vm402, %v131, 128
    %v435 = vsel %vm403, %v132, 128
    %v436 = vsel %vm404, %v133, 128
    %v437 = vsel %vm405, %v134, 128
    %v438 = vsel %vm406, %v135, 128
    %v439 = vsel %vm407, %v136, 128
    %vm440 = vcmp.lt.s32.totalorder %v408, %v410
    %v441 = vsel %vm440, %v408, %v410
    %vm442 = vcmp.lt.s32.totalorder %v409, %v411
    %v443 = vsel %vm442, %v409, %v411
    %vm444 = vcmp.lt.s32.totalorder %v441, %v412
    %v445 = vsel %vm444, %v441, %v412
    %vm446 = vcmp.lt.s32.totalorder %v443, %v413
    %v447 = vsel %vm446, %v443, %v413
    %vm448 = vcmp.lt.s32.totalorder %v445, %v414
    %v449 = vsel %vm448, %v445, %v414
    %vm450 = vcmp.lt.s32.totalorder %v447, %v415
    %v451 = vsel %vm450, %v447, %v415
    %vm452 = vcmp.lt.s32.totalorder %v449, %v416
    %v453 = vsel %vm452, %v449, %v416
    %vm454 = vcmp.lt.s32.totalorder %v451, %v417
    %v455 = vsel %vm454, %v451, %v417
    %vm456 = vcmp.lt.s32.totalorder %v453, %v418
    %v457 = vsel %vm456, %v453, %v418
    %vm458 = vcmp.lt.s32.totalorder %v455, %v419
    %v459 = vsel %vm458, %v455, %v419
    %vm460 = vcmp.lt.s32.totalorder %v457, %v420
    %v461 = vsel %vm460, %v457, %v420
    %vm462 = vcmp.lt.s32.totalorder %v459, %v421
    %v463 = vsel %vm462, %v459, %v421
    %vm464 = vcmp.lt.s32.totalorder %v461, %v422
    %v465 = vsel %vm464, %v461, %v422
    %vm466 = vcmp.lt.s32.totalorder %v463, %v423
    %v467 = vsel %vm466, %v463, %v423
    %vm468 = vcmp.lt.s32.totalorder %v465, %v467
    %v469 = vsel %vm468, %v465, %v467
    %v470 = vrot.slane %v469, 4
    %vm471 = vcmp.lt.s32.totalorder %v469, %v470
    %v472 = vsel %vm471, %v469, %v470
    %v473 = vrot.slane %v472, 2
    %vm474 = vcmp.lt.s32.totalorder %v472, %v473
    %v475 = vsel %vm474, %v472, %v473
    %v476 = vrot.slane %v475, 1
    %vm477 = vcmp.lt.s32.totalorder %v475, %v476
    %v478 = vsel %vm477, %v475, %v476
    %vm479 = vcmp.lt.s32.totalorder %v424, %v426
    %v480 = vsel %vm479, %v424, %v426
    %vm481 = vcmp.lt.s32.totalorder %v425, %v427
    %v482 = vsel %vm481, %v425, %v427
    %vm483 = vcmp.lt.s32.totalorder %v480, %v428
    %v484 = vsel %vm483, %v480, %v428
    %vm485 = vcmp.lt.s32.totalorder %v482, %v429
    %v486 = vsel %vm485, %v482, %v429
    %vm487 = vcmp.lt.s32.totalorder %v484, %v430
    %v488 = vsel %vm487, %v484, %v430
    %vm489 = vcmp.lt.s32.totalorder %v486, %v431
    %v490 = vsel %vm489, %v486, %v431
    %vm491 = vcmp.lt.s32.totalorder %v488, %v432
    %v492 = vsel %vm491, %v488, %v432
    %vm493 = vcmp.lt.s32.totalorder %v490, %v433
    %v494 = vsel %vm493, %v490, %v433
    %vm495 = vcmp.lt.s32.totalorder %v492, %v434
    %v496 = vsel %vm495, %v492, %v434
    %vm497 = vcmp.lt.s32.totalorder %v494, %v435
    %v498 = vsel %vm497, %v494, %v435
    %vm499 = vcmp.lt.s32.totalorder %v496, %v436
    %v500 = vsel %vm499, %v496, %v436
    %vm501 = vcmp.lt.s32.totalorder %v498, %v437
    %v502 = vsel %vm501, %v498, %v437
    %vm503 = vcmp.lt.s32.totalorder %v500, %v438
    %v504 = vsel %vm503, %v500, %v438
    %vm505 = vcmp.lt.s32.totalorder %v502, %v439
    %v506 = vsel %vm505, %v502, %v439
    %vm507 = vcmp.lt.s32.totalorder %v504, %v506
    %v508 = vsel %vm507, %v504, %v506
    %v509 = vrot.slane %v508, 4
    %vm510 = vcmp.lt.s32.totalorder %v508, %v509
    %v511 = vsel %vm510, %v508, %v509
    %v512 = vrot.slane %v511, 2
    %vm513 = vcmp.lt.s32.totalorder %v511, %v512
    %v514 = vsel %vm513, %v511, %v512
    %v515 = vrot.slane %v514, 1
    %vm516 = vcmp.lt.s32.totalorder %v514, %v515
    %v517 = vsel %vm516, %v514, %v515
    %s518 = smul.u32 %s166, 2
    %s519 = scalar_lea.vmem [#allocation2], %s518
    %v520 = vld [vmem:[%s519] sm:$0x3]
    %v522 = vrot.slane %v520, 1
    %v525 = vadd.f32 %v354, %v520
    %v526 = vadd.f32 %v375, %v522
    %v529 = vrot.slane %v526, 7
    %vm530 = vcmask 1041409
    %v531 = vsel %vm530, %v529, %v525
    %533 = vst [vmem:[#allocation3] sm:$0x3] %v531
    %v534 = vsub.s32 %v26, 1
    %v535 = vstv %s166
    %vm536 = vcmp.eq.s32.totalorder %v535, %v534
    %v537 = vld [vmem:[#allocation4] sm:$0x3]
    %v538 = vsel %vm536, 1, 0
    %539 = vset.pattern.permute.xlu0 0
    %540 = vperm.xlu0 %539, %v538
    %v541 = vpop.permute.xlu0 %540
    %vm542 = vcmp.eq.s32.totalorder %v541, 1
    %v543 = vsel %vm542, %v531, %v537
    %544 = vst [vmem:[#allocation4] sm:$0x3] %v543
    %vm545 = vcmp.lt.s32.totalorder %v535, %v26
    %v546 = vsel %vm545, 1, 0
    %547 = vset.pattern.permute.xlu0 0
    %548 = vperm.xlu0 %547, %v546
    %v549 = vpop.permute.xlu0 %548
    %vm550 = vcmp.eq.s32.totalorder %v549, 1
    %v551 = vsel %vm530, %v517, %v478
    %v552 = vsel %vm550, %v551, 0
    %s553 = smul.u32 %s161, 2
    %s554 = scalar_lea.vmem [#allocation5], %s553
    %555 = vst [vmem:[%s554] sm:$0x3] %v552
  $region26: #{seqmodel_forward.1} parent=0 // loop_footer
    %s163 = sadd.s32 %s161, 1
  $region27: #{seqmodel_forward.1} parent=0 // loop_footer_branch
    %160 = sbr.rel target = $region23
  $region28: #{seqmodel_forward.1} parent=0 // loop_exit
    _
  %v556 = vld [vmem:[#allocation4] sm:$0x3]
  %v557 = vlaneseq
  %v558 = vshrl.u32 %v557, 7
  %v559 = vsub.s32 0, %v558
  %v560 = vrot.slane %v556, %v559
  %562 = vbcast.lane.b32.xlu0 %v560, 256
  %v563 = vpop.permute.xlu0 %562
  %s565 = sor.u32 256, 8
  %566 = vbcast.lane.b32.xlu0 %v560, %s565
  %v567 = vpop.permute.xlu0 %566
  %s569 = sor.u32 256, 16
  %570 = vbcast.lane.b32.xlu0 %v560, %s569
  %v571 = vpop.permute.xlu0 %570
  %s573 = sor.u32 256, 24
  %574 = vbcast.lane.b32.xlu0 %v560, %s573
  %v575 = vpop.permute.xlu0 %574
  %s577 = sor.u32 256, 32
  %578 = vbcast.lane.b32.xlu0 %v560, %s577
  %v579 = vpop.permute.xlu0 %578
  %s581 = sor.u32 256, 40
  %582 = vbcast.lane.b32.xlu0 %v560, %s581
  %v583 = vpop.permute.xlu0 %582
  %s585 = sor.u32 256, 48
  %586 = vbcast.lane.b32.xlu0 %v560, %s585
  %v587 = vpop.permute.xlu0 %586
  %s589 = sor.u32 256, 56
  %590 = vbcast.lane.b32.xlu0 %v560, %s589
  %v591 = vpop.permute.xlu0 %590
  %s593 = sor.u32 256, 64
  %594 = vbcast.lane.b32.xlu0 %v560, %s593
  %v595 = vpop.permute.xlu0 %594
  %s597 = sor.u32 256, 72
  %598 = vbcast.lane.b32.xlu0 %v560, %s597
  %v599 = vpop.permute.xlu0 %598
  %s601 = sor.u32 256, 80
  %602 = vbcast.lane.b32.xlu0 %v560, %s601
  %v603 = vpop.permute.xlu0 %602
  %s605 = sor.u32 256, 88
  %606 = vbcast.lane.b32.xlu0 %v560, %s605
  %v607 = vpop.permute.xlu0 %606
  %s609 = sor.u32 256, 96
  %610 = vbcast.lane.b32.xlu0 %v560, %s609
  %v611 = vpop.permute.xlu0 %610
  %s613 = sor.u32 256, 104
  %614 = vbcast.lane.b32.xlu0 %v560, %s613
  %v615 = vpop.permute.xlu0 %614
  %s617 = sor.u32 256, 112
  %618 = vbcast.lane.b32.xlu0 %v560, %s617
  %v619 = vpop.permute.xlu0 %618
  %s621 = sor.u32 256, 120
  %622 = vbcast.lane.b32.xlu0 %v560, %s621
  %v623 = vpop.permute.xlu0 %622
  %v624 = vlaneseq
  %v625 = vshrl.u32 %v624, 7
  %v626 = vsub.s32 1, %v625
  %v627 = vrot.slane %v556, %v626
  %629 = vbcast.lane.b32.xlu0 %v627, 256
  %v630 = vpop.permute.xlu0 %629
  %s632 = sor.u32 256, 8
  %633 = vbcast.lane.b32.xlu0 %v627, %s632
  %v634 = vpop.permute.xlu0 %633
  %s636 = sor.u32 256, 16
  %637 = vbcast.lane.b32.xlu0 %v627, %s636
  %v638 = vpop.permute.xlu0 %637
  %s640 = sor.u32 256, 24
  %641 = vbcast.lane.b32.xlu0 %v627, %s640
  %v642 = vpop.permute.xlu0 %641
  %s644 = sor.u32 256, 32
  %645 = vbcast.lane.b32.xlu0 %v627, %s644
  %v646 = vpop.permute.xlu0 %645
  %s648 = sor.u32 256, 40
  %649 = vbcast.lane.b32.xlu0 %v627, %s648
  %v650 = vpop.permute.xlu0 %649
  %s652 = sor.u32 256, 48
  %653 = vbcast.lane.b32.xlu0 %v627, %s652
  %v654 = vpop.permute.xlu0 %653
  %s656 = sor.u32 256, 56
  %657 = vbcast.lane.b32.xlu0 %v627, %s656
  %v658 = vpop.permute.xlu0 %657
  %s660 = sor.u32 256, 64
  %661 = vbcast.lane.b32.xlu0 %v627, %s660
  %v662 = vpop.permute.xlu0 %661
  %s664 = sor.u32 256, 72
  %665 = vbcast.lane.b32.xlu0 %v627, %s664
  %v666 = vpop.permute.xlu0 %665
  %s668 = sor.u32 256, 80
  %669 = vbcast.lane.b32.xlu0 %v627, %s668
  %v670 = vpop.permute.xlu0 %669
  %s672 = sor.u32 256, 88
  %673 = vbcast.lane.b32.xlu0 %v627, %s672
  %v674 = vpop.permute.xlu0 %673
  %s676 = sor.u32 256, 96
  %677 = vbcast.lane.b32.xlu0 %v627, %s676
  %v678 = vpop.permute.xlu0 %677
  %s680 = sor.u32 256, 104
  %681 = vbcast.lane.b32.xlu0 %v627, %s680
  %v682 = vpop.permute.xlu0 %681
  %s684 = sor.u32 256, 112
  %685 = vbcast.lane.b32.xlu0 %v627, %s684
  %v686 = vpop.permute.xlu0 %685
  %s688 = sor.u32 256, 120
  %689 = vbcast.lane.b32.xlu0 %v627, %s688
  %v690 = vpop.permute.xlu0 %689
  %v691 = vadd.f32 %v563, %v27
  %v692 = vadd.f32 %v567, %v28
  %v693 = vadd.f32 %v571, %v29
  %v694 = vadd.f32 %v575, %v30
  %v695 = vadd.f32 %v579, %v31
  %v696 = vadd.f32 %v583, %v32
  %v697 = vadd.f32 %v587, %v33
  %v698 = vadd.f32 %v591, %v34
  %v699 = vadd.f32 %v595, %v35
  %v700 = vadd.f32 %v599, %v36
  %v701 = vadd.f32 %v603, %v37
  %v702 = vadd.f32 %v607, %v38
  %v703 = vadd.f32 %v611, %v39
  %v704 = vadd.f32 %v615, %v40
  %v705 = vadd.f32 %v619, %v41
  %v706 = vadd.f32 %v623, %v42
  %v707 = vadd.f32 %v630, %v27
  %v708 = vadd.f32 %v634, %v28
  %v709 = vadd.f32 %v638, %v29
  %v710 = vadd.f32 %v642, %v30
  %v711 = vadd.f32 %v646, %v31
  %v712 = vadd.f32 %v650, %v32
  %v713 = vadd.f32 %v654, %v33
  %v714 = vadd.f32 %v658, %v34
  %v715 = vadd.f32 %v662, %v35
  %v716 = vadd.f32 %v666, %v36
  %v717 = vadd.f32 %v670, %v37
  %v718 = vadd.f32 %v674, %v38
  %v719 = vadd.f32 %v678, %v39
  %v720 = vadd.f32 %v682, %v40
  %v721 = vadd.f32 %v686, %v41
  %v722 = vadd.f32 %v690, %v42
  %v723 = vmax.f32 %v691, %v693
  %v724 = vmax.f32 %v692, %v694
  %v725 = vmax.f32 %v723, %v695
  %v726 = vmax.f32 %v724, %v696
  %v727 = vmax.f32 %v725, %v697
  %v728 = vmax.f32 %v726, %v698
  %v729 = vmax.f32 %v727, %v699
  %v730 = vmax.f32 %v728, %v700
  %v731 = vmax.f32 %v729, %v701
  %v732 = vmax.f32 %v730, %v702
  %v733 = vmax.f32 %v731, %v703
  %v734 = vmax.f32 %v732, %v704
  %v735 = vmax.f32 %v733, %v705
  %v736 = vmax.f32 %v734, %v706
  %v737 = vmax.f32 %v735, %v736
  %v738 = vrot.slane %v737, 4
  %v739 = vmax.f32 %v737, %v738
  %v740 = vrot.slane %v739, 2
  %v741 = vmax.f32 %v739, %v740
  %v742 = vrot.slane %v741, 1
  %v743 = vmax.f32 %v741, %v742
  %v744 = vmax.f32 %v707, %v709
  %v745 = vmax.f32 %v708, %v710
  %v746 = vmax.f32 %v744, %v711
  %v747 = vmax.f32 %v745, %v712
  %v748 = vmax.f32 %v746, %v713
  %v749 = vmax.f32 %v747, %v714
  %v750 = vmax.f32 %v748, %v715
  %v751 = vmax.f32 %v749, %v716
  %v752 = vmax.f32 %v750, %v717
  %v753 = vmax.f32 %v751, %v718
  %v754 = vmax.f32 %v752, %v719
  %v755 = vmax.f32 %v753, %v720
  %v756 = vmax.f32 %v754, %v721
  %v757 = vmax.f32 %v755, %v722
  %v758 = vmax.f32 %v756, %v757
  %v759 = vrot.slane %v758, 4
  %v760 = vmax.f32 %v758, %v759
  %v761 = vrot.slane %v760, 2
  %v762 = vmax.f32 %v760, %v761
  %v763 = vrot.slane %v762, 1
  %v764 = vmax.f32 %v762, %v763
  %vm765 = vcmp.eq.f32.partialorder %v691, %v743
  %vm766 = vcmp.eq.f32.partialorder %v692, %v743
  %vm767 = vcmp.eq.f32.partialorder %v693, %v743
  %vm768 = vcmp.eq.f32.partialorder %v694, %v743
  %vm769 = vcmp.eq.f32.partialorder %v695, %v743
  %vm770 = vcmp.eq.f32.partialorder %v696, %v743
  %vm771 = vcmp.eq.f32.partialorder %v697, %v743
  %vm772 = vcmp.eq.f32.partialorder %v698, %v743
  %vm773 = vcmp.eq.f32.partialorder %v699, %v743
  %vm774 = vcmp.eq.f32.partialorder %v700, %v743
  %vm775 = vcmp.eq.f32.partialorder %v701, %v743
  %vm776 = vcmp.eq.f32.partialorder %v702, %v743
  %vm777 = vcmp.eq.f32.partialorder %v703, %v743
  %vm778 = vcmp.eq.f32.partialorder %v704, %v743
  %vm779 = vcmp.eq.f32.partialorder %v705, %v743
  %vm780 = vcmp.eq.f32.partialorder %v706, %v743
  %vm781 = vcmp.eq.f32.partialorder %v707, %v764
  %vm782 = vcmp.eq.f32.partialorder %v708, %v764
  %vm783 = vcmp.eq.f32.partialorder %v709, %v764
  %vm784 = vcmp.eq.f32.partialorder %v710, %v764
  %vm785 = vcmp.eq.f32.partialorder %v711, %v764
  %vm786 = vcmp.eq.f32.partialorder %v712, %v764
  %vm787 = vcmp.eq.f32.partialorder %v713, %v764
  %vm788 = vcmp.eq.f32.partialorder %v714, %v764
  %vm789 = vcmp.eq.f32.partialorder %v715, %v764
  %vm790 = vcmp.eq.f32.partialorder %v716, %v764
  %vm791 = vcmp.eq.f32.partialorder %v717, %v764
  %vm792 = vcmp.eq.f32.partialorder %v718, %v764
  %vm793 = vcmp.eq.f32.partialorder %v719, %v764
  %vm794 = vcmp.eq.f32.partialorder %v720, %v764
  %vm795 = vcmp.eq.f32.partialorder %v721, %v764
  %vm796 = vcmp.eq.f32.partialorder %v722, %v764
  %v797 = vsel %vm765, %v121, 128
  %v798 = vsel %vm766, %v122, 128
  %v799 = vsel %vm767, %v123, 128
  %v800 = vsel %vm768, %v124, 128
  %v801 = vsel %vm769, %v125, 128
  %v802 = vsel %vm770, %v126, 128
  %v803 = vsel %vm771, %v127, 128
  %v804 = vsel %vm772, %v128, 128
  %v805 = vsel %vm773, %v129, 128
  %v806 = vsel %vm774, %v130, 128
  %v807 = vsel %vm775, %v131, 128
  %v808 = vsel %vm776, %v132, 128
  %v809 = vsel %vm777, %v133, 128
  %v810 = vsel %vm778, %v134, 128
  %v811 = vsel %vm779, %v135, 128
  %v812 = vsel %vm780, %v136, 128
  %v813 = vsel %vm781, %v121, 128
  %v814 = vsel %vm782, %v122, 128
  %v815 = vsel %vm783, %v123, 128
  %v816 = vsel %vm784, %v124, 128
  %v817 = vsel %vm785, %v125, 128
  %v818 = vsel %vm786, %v126, 128
  %v819 = vsel %vm787, %v127, 128
  %v820 = vsel %vm788, %v128, 128
  %v821 = vsel %vm789, %v129, 128
  %v822 = vsel %vm790, %v130, 128
  %v823 = vsel %vm791, %v131, 128
  %v824 = vsel %vm792, %v132, 128
  %v825 = vsel %vm793, %v133, 128
  %v826 = vsel %vm794, %v134, 128
  %v827 = vsel %vm795, %v135, 128
  %v828 = vsel %vm796, %v136, 128
  %vm829 = vcmp.lt.s32.totalorder %v797, %v799
  %v830 = vsel %vm829, %v797, %v799
  %vm831 = vcmp.lt.s32.totalorder %v798, %v800
  %v832 = vsel %vm831, %v798, %v800
  %vm833 = vcmp.lt.s32.totalorder %v830, %v801
  %v834 = vsel %vm833, %v830, %v801
  %vm835 = vcmp.lt.s32.totalorder %v832, %v802
  %v836 = vsel %vm835, %v832, %v802
  %vm837 = vcmp.lt.s32.totalorder %v834, %v803
  %v838 = vsel %vm837, %v834, %v803
  %vm839 = vcmp.lt.s32.totalorder %v836, %v804
  %v840 = vsel %vm839, %v836, %v804
  %vm841 = vcmp.lt.s32.totalorder %v838, %v805
  %v842 = vsel %vm841, %v838, %v805
  %vm843 = vcmp.lt.s32.totalorder %v840, %v806
  %v844 = vsel %vm843, %v840, %v806
  %vm845 = vcmp.lt.s32.totalorder %v842, %v807
  %v846 = vsel %vm845, %v842, %v807
  %vm847 = vcmp.lt.s32.totalorder %v844, %v808
  %v848 = vsel %vm847, %v844, %v808
  %vm849 = vcmp.lt.s32.totalorder %v846, %v809
  %v850 = vsel %vm849, %v846, %v809
  %vm851 = vcmp.lt.s32.totalorder %v848, %v810
  %v852 = vsel %vm851, %v848, %v810
  %vm853 = vcmp.lt.s32.totalorder %v850, %v811
  %v854 = vsel %vm853, %v850, %v811
  %vm855 = vcmp.lt.s32.totalorder %v852, %v812
  %v856 = vsel %vm855, %v852, %v812
  %vm857 = vcmp.lt.s32.totalorder %v854, %v856
  %v858 = vsel %vm857, %v854, %v856
  %v859 = vrot.slane %v858, 4
  %vm860 = vcmp.lt.s32.totalorder %v858, %v859
  %v861 = vsel %vm860, %v858, %v859
  %v862 = vrot.slane %v861, 2
  %vm863 = vcmp.lt.s32.totalorder %v861, %v862
  %v864 = vsel %vm863, %v861, %v862
  %v865 = vrot.slane %v864, 1
  %vm866 = vcmp.lt.s32.totalorder %v864, %v865
  %v867 = vsel %vm866, %v864, %v865
  %vm868 = vcmp.lt.s32.totalorder %v813, %v815
  %v869 = vsel %vm868, %v813, %v815
  %vm870 = vcmp.lt.s32.totalorder %v814, %v816
  %v871 = vsel %vm870, %v814, %v816
  %vm872 = vcmp.lt.s32.totalorder %v869, %v817
  %v873 = vsel %vm872, %v869, %v817
  %vm874 = vcmp.lt.s32.totalorder %v871, %v818
  %v875 = vsel %vm874, %v871, %v818
  %vm876 = vcmp.lt.s32.totalorder %v873, %v819
  %v877 = vsel %vm876, %v873, %v819
  %vm878 = vcmp.lt.s32.totalorder %v875, %v820
  %v879 = vsel %vm878, %v875, %v820
  %vm880 = vcmp.lt.s32.totalorder %v877, %v821
  %v881 = vsel %vm880, %v877, %v821
  %vm882 = vcmp.lt.s32.totalorder %v879, %v822
  %v883 = vsel %vm882, %v879, %v822
  %vm884 = vcmp.lt.s32.totalorder %v881, %v823
  %v885 = vsel %vm884, %v881, %v823
  %vm886 = vcmp.lt.s32.totalorder %v883, %v824
  %v887 = vsel %vm886, %v883, %v824
  %vm888 = vcmp.lt.s32.totalorder %v885, %v825
  %v889 = vsel %vm888, %v885, %v825
  %vm890 = vcmp.lt.s32.totalorder %v887, %v826
  %v891 = vsel %vm890, %v887, %v826
  %vm892 = vcmp.lt.s32.totalorder %v889, %v827
  %v893 = vsel %vm892, %v889, %v827
  %vm894 = vcmp.lt.s32.totalorder %v891, %v828
  %v895 = vsel %vm894, %v891, %v828
  %vm896 = vcmp.lt.s32.totalorder %v893, %v895
  %v897 = vsel %vm896, %v893, %v895
  %v898 = vrot.slane %v897, 4
  %vm899 = vcmp.lt.s32.totalorder %v897, %v898
  %v900 = vsel %vm899, %v897, %v898
  %v901 = vrot.slane %v900, 2
  %vm902 = vcmp.lt.s32.totalorder %v900, %v901
  %v903 = vsel %vm902, %v900, %v901
  %v904 = vrot.slane %v903, 1
  %vm905 = vcmp.lt.s32.totalorder %v903, %v904
  %v906 = vsel %vm905, %v903, %v904
  %vm907 = vcmask 1041409
  %v908 = vsel %vm907, %v906, %v867
  %909 = vrot.lane.b32.xlu0 %v908, 122
  %v910 = vpop.permute.xlu0 %909
  %911 = vst.msk [vmem:[#allocation6] sm:$0x3] %vm139, %v910
  %s912 = scalar_lea.vmem %s6, 14
  %913 = vst.msk [vmem:[%s912] sm:$0x3] %vm139, %v910
  %p914 = scmp.lt.s32.totalorder %s25, 7
  %s915 = scalar_select %p914, %s25, 7
  // While loop
  $region29: #{seqmodel_forward.1} parent=0 // loop_pre_header
    _
  $region30: #{seqmodel_forward.1} parent=0 // loop_header
    %s917 = sphi 0, %s919
    %p918 = scmp.ge.s32.totalorder %s917, %s915
  $region31: #{seqmodel_forward.1} parent=0 // loop_header_branch
    %921 = sbr.rel (%p918) target = $region35
  $region32: #{seqmodel_forward.1} parent=0 // loop_body
    %s922 = ssub.s32 %s915, 1
    %s923 = ssub.s32 %s922, %s917
    %s924 = smul.u32 %s923, 2
    %s925 = scalar_lea.vmem [#allocation5], %s924
    %v926 = vld [vmem:[%s925] sm:$0x3]
    %v927 = vld [vmem:[#allocation6] sm:$0x3]
    %928 = vset.pattern.permute.xlu0 0
    %929 = vperm.xlu0 %928, %v927
    %v930 = vpop.permute.xlu0 %929
    %vm931 = vcmp.eq.s32.totalorder %v138, %v930
    %v932 = vsel %vm931, %v926, 0
    %vm933 = vcmask 1041408
    %v934 = vsel %vm933, %v932, 0
    %v935 = vand.u32 %v934, 65535
    %v936 = vshrl.u32 %v934, 16
    %v937 = vcvt.s32.f32 %v935
    %v938 = vcvt.s32.f32 %v936
    %939 = vadd.xlane.f32.xlu0 %v937
    %v940 = vpop.xlane.xlu0 %939
    %941 = vadd.xlane.f32.xlu0 %v938
    %v942 = vpop.xlane.xlu0 %941
    %v943 = vcvt.f32.s32 %v940
    %v944 = vcvt.f32.s32 %v942
    %v945 = vshll.u32 %v944, 16
    %v946 = vadd.s32 %v945, %v943
    %v947 = vsub.s32 %v26, 1
    %v948 = vstv %s923
    %vm949 = vcmp.eq.s32.totalorder %v948, %v947
    %v950 = vsel %vm949, %v910, %v946
    %951 = vst.msk [vmem:[#allocation6] sm:$0x3] %vm139, %v950
    %s952 = scalar_lea.vmem %s6, %s924
    %953 = vst.msk [vmem:[%s952] sm:$0x3] %vm139, %v950
  $region33: #{seqmodel_forward.1} parent=0 // loop_footer
    %s919 = sadd.s32 %s917, 1
  $region34: #{seqmodel_forward.1} parent=0 // loop_footer_branch
    %916 = sbr.rel target = $region30
  $region35: #{seqmodel_forward.1} parent=0 // loop_exit
    _
  // Predicated region
  $region36: #{seqmodel_forward.1} parent=0 // pred_check
    _
  $region37: #{seqmodel_forward.1} parent=0 // pred_check_branch
    %955 = sbr.rel (0) target = $region39
  $region38: #{seqmodel_forward.1} parent=0 // pred_region
    _
  $region39: #{seqmodel_forward.1} parent=0 // pred_fallthru
    _
  // Predicated region
  $region40: #{seqmodel_forward.1} parent=0 // pred_check
    _
  $region41: #{seqmodel_forward.1} parent=0 // pred_check_branch
    %957 = sbr.rel (0) target = $region43
  $region42: #{seqmodel_forward.1} parent=0 // pred_region
    _
  $region43: #{seqmodel_forward.1} parent=0 // pred_fallthru
    _

</llo_original>
